<compile_context>
chip_gen: v5e
topology: v5e:2x2
jax: 0.10.0
libtpu: 0.0.40
codegen_flags: <defaults>
</compile_context>

<pallas_src>
import functools

import jax
import jax.numpy as jnp
from jax import lax
from jax.experimental import pallas as pl
from jax.experimental.pallas import tpu as pltpu

LANE = 128            # packed output slab width (lane-dense stores)
SUBLANE = 8           # sublane granularity for the row axis
MAX_TM = 2048         # max rows per grid step (double-buffered slab ~2 MiB)
MIN_SPLIT_ROWS = 512  # above this, force >=2 grid steps (v7x dual-TC sharding)


def _round_up(x, m):
    return (x + m - 1) // m * m


# ---------------------------------------------------------------------------
# Fused kernel: one-hot gathers + fused (gather @ W1) + W2 head, all written
# into a single 128-lane output slab.
# ---------------------------------------------------------------------------
def _fused_forward_kernel(uid_ref, bid_ref, uembp_ref, bembp_ref, fused1_ref,
                          w2p_ref, b2p_ref, out_ref, *, pred_off, pred_width):
    tm = uid_ref.shape[0]
    num_user = uembp_ref.shape[0]
    num_book = bembp_ref.shape[0]

    # Vectorized row gather as one-hot matmuls on the MXU (tables are tiny and
    # VMEM-resident).  Exact in f32: each row is 1*row + 0*rest.
    u_onehot = (uid_ref[...] ==
                lax.broadcasted_iota(jnp.int32, (tm, num_user), 1)).astype(jnp.float32)
    b_onehot = (bid_ref[...] ==
                lax.broadcasted_iota(jnp.int32, (tm, num_book), 1)).astype(jnp.float32)

    # uemb_pad / bemb_pad occupy disjoint lane ranges (0:32 and 32:64) of the
    # 128-lane slab, so their gather outputs are full-lane and simply add.
    xu_slab = jnp.dot(u_onehot, uembp_ref[...], preferred_element_type=jnp.float32)
    xb_slab = jnp.dot(b_onehot, bembp_ref[...], preferred_element_type=jnp.float32)

    # Classifier: fused1 = book_emb @ W1 + b1 (precomputed, h4 padded to 128),
    # so lin1 is a single gather-like matmul independent of xb_slab.
    h = jnp.maximum(
        jnp.dot(b_onehot, fused1_ref[...], preferred_element_type=jnp.float32), 0.0)
    z = jnp.dot(h, w2p_ref[...], preferred_element_type=jnp.float32) + b2p_ref[...]

    # sigmoid(0) = 0.5 on the zero-padded columns -> mask to the real output
    # lanes (pred_off : pred_off + pred_width) before adding into the slab.
    lane = lax.broadcasted_iota(jnp.int32, (1, out_ref.shape[1]), 1)
    pred_mask = ((lane >= pred_off) &
                 (lane < pred_off + pred_width)).astype(jnp.float32)
    pred_slab = jax.nn.sigmoid(z) * pred_mask

    out_ref[...] = (xu_slab + xb_slab + pred_slab).astype(out_ref.dtype)


# ---------------------------------------------------------------------------
# One-time parameter preparation (padding / fusion) — do NOT call per step.
# ---------------------------------------------------------------------------
def prepare_model_params(params):
    uemb = params["user_emb"].astype(jnp.float32)
    bemb = params["book_emb"].astype(jnp.float32)
    w1 = params["w1"].astype(jnp.float32)    # (hidden, hidden//4)
    b1 = params["b1"].astype(jnp.float32)    # (1, hidden//4)
    w2 = params["w2"].astype(jnp.float32)    # (hidden//4, out_channels)
    b2 = params["b2"].astype(jnp.float32)    # (1, out_channels)

    num_user, hidden = uemb.shape
    num_book = bemb.shape[0]
    h4, c = w2.shape
    pred_off = 2 * hidden
    assert pred_off + c <= LANE, "packed slab needs 2*hidden + out_channels <= 128"
    assert h4 <= LANE

    # Embedding tables placed in disjoint lane ranges of the 128-lane slab.
    uemb_pad = jnp.zeros((num_user, LANE), jnp.float32).at[:, :hidden].set(uemb)
    bemb_pad = jnp.zeros((num_book, LANE), jnp.float32).at[:, hidden:2 * hidden].set(bemb)

    # Fuse gather + lin1: per-row this equals book_emb[idx] @ W1 + b1 exactly.
    fused1 = jnp.zeros((num_book, LANE), jnp.float32).at[:, :h4].set(bemb @ w1 + b1)

    # lin2 weights padded to MXU-native (128, 128), real output at lanes
    # pred_off : pred_off + c.
    w2p = jnp.zeros((LANE, LANE), jnp.float32).at[:h4, pred_off:pred_off + c].set(w2)
    b2p = jnp.zeros((1, LANE), jnp.float32).at[:, pred_off:pred_off + c].set(b2)

    return {
        "uemb_pad": uemb_pad, "bemb_pad": bemb_pad, "fused1": fused1,
        "w2p": w2p, "b2p": b2p,
        "hidden": hidden, "out_channels": c, "pred_off": pred_off,
    }


# ---------------------------------------------------------------------------
# Model.forward (model_type='MLP' path)
# ---------------------------------------------------------------------------
def model_forward(prep, user_n_id, book_n_id):
    uemb_pad, bemb_pad = prep["uemb_pad"], prep["bemb_pad"]
    fused1, w2p, b2p = prep["fused1"], prep["w2p"], prep["b2p"]
    hidden, c, pred_off = prep["hidden"], prep["out_channels"], prep["pred_off"]
    num_user = uemb_pad.shape[0]
    num_book = bemb_pad.shape[0]

    n_user = int(user_n_id.shape[0])
    n_book = int(book_n_id.shape[0])
    n = max(n_user, n_book)

    # Row tile: single step for small batches; >=2 steps (v7x dual-TC) above
    # MIN_SPLIT_ROWS; capped at MAX_TM rows/step.
    n8 = _round_up(max(n, SUBLANE), SUBLANE)
    if n8 <= MIN_SPLIT_ROWS:
        tm = n8
    else:
        tm = min(MAX_TM, _round_up(pl.cdiv(n8, 2), SUBLANE))
    n_pad = _round_up(n8, tm)
    grid = (n_pad // tm,)

    def pad_ids(ids, n_valid):
        ids = ids.astype(jnp.int32)
        ids = jnp.pad(ids, (0, n_pad - n_valid))   # pad with index 0 (valid row)
        return ids.reshape(n_pad, 1)

    uid = pad_ids(user_n_id, n_user)
    bid = pad_ids(book_n_id, n_book)

    def const_spec(shape):
        return pl.BlockSpec(shape, lambda i: (0,) * len(shape))

    flops = 2 * n_pad * LANE * (num_user + 2 * num_book + LANE)
    bytes_accessed = 4 * (uemb_pad.size + bemb_pad.size + fused1.size + w2p.size
                          + b2p.size + uid.size + bid.size + n_pad * LANE)
    cost = pl.CostEstimate(flops=flops, transcendentals=n_pad * LANE,
                           bytes_accessed=bytes_accessed)

    kernel = functools.partial(_fused_forward_kernel,
                               pred_off=pred_off, pred_width=c)

    slab = pl.pallas_call(
        kernel,
        out_shape=jax.ShapeDtypeStruct((n_pad, LANE), jnp.float32),
        grid_spec=pltpu.PrefetchScalarGridSpec(
            num_scalar_prefetch=0,
            grid=grid,
            in_specs=[
                pl.BlockSpec((tm, 1), lambda i: (i, 0)),   # user n_id tile
                pl.BlockSpec((tm, 1), lambda i: (i, 0)),   # book n_id tile
                const_spec(uemb_pad.shape),                # VMEM-resident constants
                const_spec(bemb_pad.shape),
                const_spec(fused1.shape),
                const_spec(w2p.shape),
                const_spec(b2p.shape),
            ],
            out_specs=pl.BlockSpec((tm, LANE), lambda i: (i, 0)),
        ),
        compiler_params=pltpu.CompilerParams(
            dimension_semantics=("parallel",),             # row tiles independent
            vmem_limit_bytes=32 * 1024 * 1024),            # headroom on v5e default
        cost_estimate=cost,
    )(uid, bid, uemb_pad, bemb_pad, fused1, w2p, b2p)

    x_user = slab[:n_user, :hidden]
    x_book = slab[:n_book, hidden:2 * hidden]
    pred = slab[:n_book, pred_off:pred_off + c]
    return pred, {"user": x_user, "book": x_book}


if __name__ == "__main__":
    hidden_channels = 32
    out_channels = 4
    num_user_nodes = 64
    num_book_nodes = 64
    n_sampled = 16   # size of n_id mini-batch per node type

    key = jax.random.PRNGKey(0)
    k_ue, k_be, k_w1, k_b1, k_w2, k_b2, k_uid, k_bid = jax.random.split(key, 8)

    h4 = hidden_channels // 4
    params = {
        # nn.Embedding default init: N(0, 1)
        "user_emb": jax.random.normal(k_ue, (num_user_nodes, hidden_channels), jnp.float32),
        "book_emb": jax.random.normal(k_be, (num_book_nodes, hidden_channels), jnp.float32),
        # nn.Linear default init: U(-1/sqrt(in), 1/sqrt(in)); stored (in, out)
        "w1": jax.random.uniform(k_w1, (hidden_channels, h4), jnp.float32,
                                 -1.0 / hidden_channels**0.5, 1.0 / hidden_channels**0.5),
        "b1": jax.random.uniform(k_b1, (1, h4), jnp.float32,
                                 -1.0 / hidden_channels**0.5, 1.0 / hidden_channels**0.5),
        "w2": jax.random.uniform(k_w2, (h4, out_channels), jnp.float32,
                                 -1.0 / h4**0.5, 1.0 / h4**0.5),
        "b2": jax.random.uniform(k_b2, (1, out_channels), jnp.float32,
                                 -1.0 / h4**0.5, 1.0 / h4**0.5),
    }

    user_n_id = jax.random.randint(k_uid, (n_sampled,), 0, num_user_nodes, jnp.int32)
    book_n_id = jax.random.randint(k_bid, (n_sampled,), 0, num_book_nodes, jnp.int32)

    prep = prepare_model_params(params)          # one-time padding / fusion
    pred, x_dict = model_forward(prep, user_n_id, book_n_id)
    jax.block_until_ready((pred, x_dict))

    # Pure-JAX reference check.
    xu_ref = params["user_emb"][user_n_id]
    xb_ref = params["book_emb"][book_n_id]
    h_ref = jnp.maximum(xb_ref @ params["w1"] + params["b1"], 0.0)
    pred_ref = jax.nn.sigmoid(h_ref @ params["w2"] + params["b2"])

    assert pred.shape == (n_sampled, out_channels), "pred shape mismatch"
    assert jnp.allclose(x_dict["user"], xu_ref, atol=1e-6), "user embedding mismatch"
    assert jnp.allclose(x_dict["book"], xb_ref, atol=1e-6), "book embedding mismatch"
    assert jnp.allclose(pred, pred_ref, atol=1e-5), "classifier mismatch"

    print("KERNEL_OK")
</pallas_src>

<mosaic_0001>
module attributes {stable_mosaic.version = 11 : i64} {
  func.func @_fused_forward_kernel(%arg0: i32, %arg1: memref<16x1xi32, #tpu.memory_space<vmem>>, %arg2: memref<16x1xi32, #tpu.memory_space<vmem>>, %arg3: memref<64x128xf32, #tpu.memory_space<vmem>>, %arg4: memref<64x128xf32, #tpu.memory_space<vmem>>, %arg5: memref<64x128xf32, #tpu.memory_space<vmem>>, %arg6: memref<128x128xf32, #tpu.memory_space<vmem>>, %arg7: memref<1x128xf32, #tpu.memory_space<vmem>>, %arg8: memref<16x128xf32, #tpu.memory_space<vmem>>) attributes {dimension_semantics = [#tpu.dimension_semantics<parallel>], iteration_bounds = array<i64: 1>, scalar_prefetch = 0 : i64, scratch_operands = 0 : i64, tpu.core_type = #tpu.core_type<tc>, window_params = [{transform_indices = @transform_0, window_bounds = array<i64: 16, 1>}, {transform_indices = @transform_1, window_bounds = array<i64: 16, 1>}, {pipeline_mode = #tpu.pipeline_mode<synchronous>, transform_indices = @transform_2, window_bounds = array<i64: 64, 128>}, {pipeline_mode = #tpu.pipeline_mode<synchronous>, transform_indices = @transform_3, window_bounds = array<i64: 64, 128>}, {pipeline_mode = #tpu.pipeline_mode<synchronous>, transform_indices = @transform_4, window_bounds = array<i64: 64, 128>}, {pipeline_mode = #tpu.pipeline_mode<synchronous>, transform_indices = @transform_5, window_bounds = array<i64: 128, 128>}, {pipeline_mode = #tpu.pipeline_mode<synchronous>, transform_indices = @transform_6, window_bounds = array<i64: 1, 128>}, {transform_indices = @transform_7, window_bounds = array<i64: 16, 128>}]} {
    %c0 = arith.constant 0 : index
    %c0_0 = arith.constant 0 : index
    %0 = vector.load %arg1[%c0, %c0_0] : memref<16x1xi32, #tpu.memory_space<vmem>>, vector<16x1xi32>
    %1 = tpu.iota {dimensions = array<i32: 1>} : vector<16x64xi32>
    %2 = vector.broadcast %0 : vector<16x1xi32> to vector<16x64xi32>
    %3 = arith.cmpi eq, %2, %1 : vector<16x64xi32>
    %4 = arith.extui %3 : vector<16x64xi1> to vector<16x64xi32>
    %5 = arith.sitofp %4 : vector<16x64xi32> to vector<16x64xf32>
    %c0_1 = arith.constant 0 : index
    %c0_2 = arith.constant 0 : index
    %6 = vector.load %arg2[%c0_1, %c0_2] : memref<16x1xi32, #tpu.memory_space<vmem>>, vector<16x1xi32>
    %7 = tpu.iota {dimensions = array<i32: 1>} : vector<16x64xi32>
    %8 = vector.broadcast %6 : vector<16x1xi32> to vector<16x64xi32>
    %9 = arith.cmpi eq, %8, %7 : vector<16x64xi32>
    %10 = arith.extui %9 : vector<16x64xi1> to vector<16x64xi32>
    %11 = arith.sitofp %10 : vector<16x64xi32> to vector<16x64xf32>
    %c0_3 = arith.constant 0 : index
    %c0_4 = arith.constant 0 : index
    %12 = vector.load %arg3[%c0_3, %c0_4] : memref<64x128xf32, #tpu.memory_space<vmem>>, vector<64x128xf32>
    %cst = arith.constant dense<0.000000e+00> : vector<16x128xf32>
    %13 = tpu.matmul %5, %12, %cst {dimension_numbers = #tpu.dot_dimension_numbers<[1], [0], [0], [1], [0, 0, 1, 1], [], []>} : vector<16x64xf32>, vector<64x128xf32>, vector<16x128xf32> -> vector<16x128xf32>
    %c0_5 = arith.constant 0 : index
    %c0_6 = arith.constant 0 : index
    %14 = vector.load %arg4[%c0_5, %c0_6] : memref<64x128xf32, #tpu.memory_space<vmem>>, vector<64x128xf32>
    %cst_7 = arith.constant dense<0.000000e+00> : vector<16x128xf32>
    %15 = tpu.matmul %11, %14, %cst_7 {dimension_numbers = #tpu.dot_dimension_numbers<[1], [0], [0], [1], [0, 0, 1, 1], [], []>} : vector<16x64xf32>, vector<64x128xf32>, vector<16x128xf32> -> vector<16x128xf32>
    %c0_8 = arith.constant 0 : index
    %c0_9 = arith.constant 0 : index
    %16 = vector.load %arg5[%c0_8, %c0_9] : memref<64x128xf32, #tpu.memory_space<vmem>>, vector<64x128xf32>
    %cst_10 = arith.constant dense<0.000000e+00> : vector<16x128xf32>
    %17 = tpu.matmul %11, %16, %cst_10 {dimension_numbers = #tpu.dot_dimension_numbers<[1], [0], [0], [1], [0, 0, 1, 1], [], []>} : vector<16x64xf32>, vector<64x128xf32>, vector<16x128xf32> -> vector<16x128xf32>
    %cst_11 = arith.constant 0.000000e+00 : f32
    %18 = vector.broadcast %cst_11 : f32 to vector<16x128xf32>
    %19 = arith.maximumf %17, %18 : vector<16x128xf32>
    %c0_12 = arith.constant 0 : index
    %c0_13 = arith.constant 0 : index
    %20 = vector.load %arg6[%c0_12, %c0_13] : memref<128x128xf32, #tpu.memory_space<vmem>>, vector<128x128xf32>
    %cst_14 = arith.constant dense<0.000000e+00> : vector<16x128xf32>
    %21 = tpu.matmul %19, %20, %cst_14 {dimension_numbers = #tpu.dot_dimension_numbers<[1], [0], [0], [1], [0, 0, 1, 1], [], []>} : vector<16x128xf32>, vector<128x128xf32>, vector<16x128xf32> -> vector<16x128xf32>
    %c0_15 = arith.constant 0 : index
    %c0_16 = arith.constant 0 : index
    %22 = vector.load %arg7[%c0_15, %c0_16] : memref<1x128xf32, #tpu.memory_space<vmem>>, vector<1x128xf32>
    %23 = vector.broadcast %22 : vector<1x128xf32> to vector<16x128xf32>
    %24 = arith.addf %21, %23 : vector<16x128xf32>
    %25 = tpu.iota {dimensions = array<i32: 1>} : vector<1x128xi32>
    %c64_i32 = arith.constant 64 : i32
    %26 = vector.broadcast %c64_i32 : i32 to vector<1x128xi32>
    %27 = arith.cmpi sge, %25, %26 : vector<1x128xi32>
    %c68_i32 = arith.constant 68 : i32
    %28 = vector.broadcast %c68_i32 : i32 to vector<1x128xi32>
    %29 = arith.cmpi slt, %25, %28 : vector<1x128xi32>
    %30 = arith.andi %27, %29 : vector<1x128xi1>
    %31 = arith.extui %30 : vector<1x128xi1> to vector<1x128xi32>
    %32 = arith.sitofp %31 : vector<1x128xi32> to vector<1x128xf32>
    %33 = arith.negf %24 : vector<16x128xf32>
    %34 = math.exp %33 : vector<16x128xf32>
    %cst_17 = arith.constant 1.000000e+00 : f32
    %35 = vector.broadcast %cst_17 : f32 to vector<16x128xf32>
    %36 = arith.addf %35, %34 : vector<16x128xf32>
    %37 = arith.divf %35, %36 : vector<16x128xf32>
    %38 = vector.broadcast %32 : vector<1x128xf32> to vector<16x128xf32>
    %39 = arith.mulf %37, %38 : vector<16x128xf32>
    %40 = arith.addf %13, %15 : vector<16x128xf32>
    %41 = arith.addf %40, %39 : vector<16x128xf32>
    %c0_18 = arith.constant 0 : index
    %c0_19 = arith.constant 0 : index
    %42 = vector.load %arg8[%c0_18, %c0_19] : memref<16x128xf32, #tpu.memory_space<vmem>>, vector<16x128xf32>
    tpu.vector_store %arg8[%c0_18, %c0_19], %41 {strides = array<i32>} : memref<16x128xf32, #tpu.memory_space<vmem>>, vector<16x128xf32>,
    return
  }
  func.func @transform_0(%arg0: i32) -> (i32, i32) {
    %c0_i32 = arith.constant 0 : i32
    %c0_i32_0 = arith.constant 0 : i32
    return %arg0, %c0_i32 : i32, i32
  }
  func.func @transform_1(%arg0: i32) -> (i32, i32) {
    %c0_i32 = arith.constant 0 : i32
    %c0_i32_0 = arith.constant 0 : i32
    return %arg0, %c0_i32 : i32, i32
  }
  func.func @transform_2(%arg0: i32) -> (i32, i32) {
    %c0_i32 = arith.constant 0 : i32
    %c0_i32_0 = arith.constant 0 : i32
    %c0_i32_1 = arith.constant 0 : i32
    return %c0_i32, %c0_i32_0 : i32, i32
  }
  func.func @transform_3(%arg0: i32) -> (i32, i32) {
    %c0_i32 = arith.constant 0 : i32
    %c0_i32_0 = arith.constant 0 : i32
    %c0_i32_1 = arith.constant 0 : i32
    return %c0_i32, %c0_i32_0 : i32, i32
  }
  func.func @transform_4(%arg0: i32) -> (i32, i32) {
    %c0_i32 = arith.constant 0 : i32
    %c0_i32_0 = arith.constant 0 : i32
    %c0_i32_1 = arith.constant 0 : i32
    return %c0_i32, %c0_i32_0 : i32, i32
  }
  func.func @transform_5(%arg0: i32) -> (i32, i32) {
    %c0_i32 = arith.constant 0 : i32
    %c0_i32_0 = arith.constant 0 : i32
    %c0_i32_1 = arith.constant 0 : i32
    return %c0_i32, %c0_i32_0 : i32, i32
  }
  func.func @transform_6(%arg0: i32) -> (i32, i32) {
    %c0_i32 = arith.constant 0 : i32
    %c0_i32_0 = arith.constant 0 : i32
    %c0_i32_1 = arith.constant 0 : i32
    return %c0_i32, %c0_i32_0 : i32, i32
  }
  func.func @transform_7(%arg0: i32) -> (i32, i32) {
    %c0_i32 = arith.constant 0 : i32
    %c0_i32_0 = arith.constant 0 : i32
    return %arg0, %c0_i32 : i32, i32
  }
}

</mosaic_0001>

<llo_original>
// kernel: tpu_custom_call.1
$region0: #{tpu_custom_call.1}
  #allocation0 [shape = 'u32[]', space=smem, size = 0x4, offset = 0x4, fixed_abs, tag = 'smem constant byte address 0x4 - core index']
  #allocation1 [shape = 'u32[72,128]{1,0:T(1,128)}', space=vmem, size = 0x9000, scoped, tag = 'internal scratch']
  %s0 = inlined_call_operand.vmem [shape: s32[16,1], index: 0, kind: input, shape index: {}]
  %s1 = inlined_call_operand.vmem [shape: s32[16,1], index: 1, kind: input, shape index: {}]
  %s2 = inlined_call_operand.hbm [shape: f32[64,128], index: 2, kind: input, shape index: {}]
  %s3 = inlined_call_operand.hbm [shape: f32[64,128], index: 3, kind: input, shape index: {}]
  %s4 = inlined_call_operand.hbm [shape: f32[64,128], index: 4, kind: input, shape index: {}]
  %s5 = inlined_call_operand.hbm [shape: f32[128,128], index: 5, kind: input, shape index: {}]
  %s6 = inlined_call_operand.vmem [shape: f32[1,128], index: 6, kind: input, shape index: {}]
  %s7 = inlined_call_operand.hbm [shape: f32[16,128], index: 7, kind: output, shape index: {}]
  %s8 = sld [smem:[#allocation0]]
  $region54: #{tpu_custom_call.1} parent=0
    _
  %s10 = ssub.s32 1, %s8
  %s11 = scalar_select 0, %s10, %s8
  $region1: #{tpu_custom_call.1} parent=0
    #allocation2 [shape = 'u8[32768]{0}', space=vmem, size = 0x8000, scoped, tag = 'input window, operand 2, single buffered']
    #allocation3 [shape = 's32[1]{0}', space=sflag, size = 0x4, scoped, tag = 'scoped memory for tpu_custom_call.1']
    #allocation4 [shape = 's32[1]{0}', space=sflag, size = 0x4, scoped, tag = 'scoped memory for tpu_custom_call.1']
    #allocation5 [shape = 'u8[32768]{0}', space=vmem, size = 0x8000, scoped, tag = 'input window, operand 3, single buffered']
    #allocation6 [shape = 's32[1]{0}', space=sflag, size = 0x4, scoped, tag = 'scoped memory for tpu_custom_call.1']
    #allocation7 [shape = 'u8[32768]{0}', space=vmem, size = 0x8000, scoped, tag = 'input window, operand 4, single buffered']
    #allocation8 [shape = 'u8[65536]{0}', space=vmem, size = 0x10000, scoped, tag = 'input window, operand 5, single buffered']
    #allocation9 [shape = 's32[1]{0}', space=sflag, size = 0x4, scoped, tag = 'scoped memory for tpu_custom_call.1']
    #allocation10 [shape = 'u8[8192]{0}', space=vmem, size = 0x2000, scoped, tag = 'output window, operand 0, single buffered']
    %12 = vsyncpa [#allocation3], 0
    %13 = vsyncpa [#allocation6], 0
    %14 = vsyncpa [#allocation9], 0
    %15 = vsyncpa [#allocation4], 0
    // Predicated region
    $region2: #{tpu_custom_call.1} parent=1 // pred_check
      _
    $region3: #{tpu_custom_call.1} parent=1 // pred_check_branch
      %17 = sbr.rel (0) target = $region5
    $region4: #{tpu_custom_call.1} parent=1 // pred_region
      _
    $region5: #{tpu_custom_call.1} parent=1 // pred_fallthru
      _
    // Predicated region
    $region6: #{tpu_custom_call.1} parent=1 // pred_check
      _
    $region7: #{tpu_custom_call.1} parent=1 // pred_check_branch
      %19 = sbr.rel (0) target = $region9
    $region8: #{tpu_custom_call.1} parent=1 // pred_region
      _
    $region9: #{tpu_custom_call.1} parent=1 // pred_fallthru
      _
    // Predicated region
    $region10: #{tpu_custom_call.1} parent=1 // pred_check
      _
    $region11: #{tpu_custom_call.1} parent=1 // pred_check_branch
      %21 = sbr.rel (0) target = $region13
    $region12: #{tpu_custom_call.1} parent=1 // pred_region
      %23 = vsyncadd [#allocation3], 0
      %s24 = sshll.u32 %s2, 4
      %s25 = int_to_ptr.hbm [resolvable:$true] %s24
      %s26 = sshll.u32 [#allocation2], 4
      %s27 = int_to_ptr.vmem [resolvable:$true] %s26
      %32 = dma.hbm_to_vmem [thread:$0]  %s25, 1024, %s27, [#allocation3], 128, 128, 8
    $region13: #{tpu_custom_call.1} parent=1 // pred_fallthru
      _
    // Predicated region
    $region14: #{tpu_custom_call.1} parent=1 // pred_check
      _
    $region15: #{tpu_custom_call.1} parent=1 // pred_check_branch
      %34 = sbr.rel (0) target = $region17
    $region16: #{tpu_custom_call.1} parent=1 // pred_region
      %36 = vsyncadd [#allocation6], 0
      %s37 = sshll.u32 %s3, 4
      %s38 = int_to_ptr.hbm [resolvable:$true] %s37
      %s39 = sshll.u32 [#allocation5], 4
      %s40 = int_to_ptr.vmem [resolvable:$true] %s39
      %45 = dma.hbm_to_vmem [thread:$0]  %s38, 1024, %s40, [#allocation6], 128, 128, 8
    $region17: #{tpu_custom_call.1} parent=1 // pred_fallthru
      _
    // Predicated region
    $region18: #{tpu_custom_call.1} parent=1 // pred_check
      _
    $region19: #{tpu_custom_call.1} parent=1 // pred_check_branch
      %47 = sbr.rel (0) target = $region21
    $region20: #{tpu_custom_call.1} parent=1 // pred_region
      %49 = vsyncadd [#allocation6], 0
      %s50 = sshll.u32 %s4, 4
      %s51 = int_to_ptr.hbm [resolvable:$true] %s50
      %s52 = sshll.u32 [#allocation7], 4
      %s53 = int_to_ptr.vmem [resolvable:$true] %s52
      %58 = dma.hbm_to_vmem [thread:$0]  %s51, 1024, %s53, [#allocation6], 128, 128, 8
    $region21: #{tpu_custom_call.1} parent=1 // pred_fallthru
      _
    // Predicated region
    $region22: #{tpu_custom_call.1} parent=1 // pred_check
      _
    $region23: #{tpu_custom_call.1} parent=1 // pred_check_branch
      %60 = sbr.rel (0) target = $region25
    $region24: #{tpu_custom_call.1} parent=1 // pred_region
      %62 = vsyncadd [#allocation9], 0
      %s63 = sshll.u32 %s5, 4
      %s64 = int_to_ptr.hbm [resolvable:$true] %s63
      %s65 = sshll.u32 [#allocation8], 4
      %s66 = int_to_ptr.vmem [resolvable:$true] %s65
      %71 = dma.hbm_to_vmem [thread:$0]  %s64, 2048, %s66, [#allocation9], 128, 128, 8
    $region25: #{tpu_custom_call.1} parent=1 // pred_fallthru
      _
    // Predicated region
    $region26: #{tpu_custom_call.1} parent=1 // pred_check
      _
    $region27: #{tpu_custom_call.1} parent=1 // pred_check_branch
      %73 = sbr.rel (0) target = $region29
    $region28: #{tpu_custom_call.1} parent=1 // pred_region
      _
    $region29: #{tpu_custom_call.1} parent=1 // pred_fallthru
      _
    // Predicated region
    $region30: #{tpu_custom_call.1} parent=1 // pred_check
      _
    $region31: #{tpu_custom_call.1} parent=1 // pred_check_branch
      %75 = sbr.rel (0) target = $region33
    $region32: #{tpu_custom_call.1} parent=1 // pred_region
      %77 = dma.done [#allocation3], 1024
    $region33: #{tpu_custom_call.1} parent=1 // pred_fallthru
      _
    // Predicated region
    $region34: #{tpu_custom_call.1} parent=1 // pred_check
      _
    $region35: #{tpu_custom_call.1} parent=1 // pred_check_branch
      %79 = sbr.rel (0) target = $region37
    $region36: #{tpu_custom_call.1} parent=1 // pred_region
      %81 = dma.done [#allocation6], 1024
    $region37: #{tpu_custom_call.1} parent=1 // pred_fallthru
      _
    // Predicated region
    $region38: #{tpu_custom_call.1} parent=1 // pred_check
      _
    $region39: #{tpu_custom_call.1} parent=1 // pred_check_branch
      %83 = sbr.rel (0) target = $region41
    $region40: #{tpu_custom_call.1} parent=1 // pred_region
      %85 = dma.done [#allocation6], 1024
    $region41: #{tpu_custom_call.1} parent=1 // pred_fallthru
      _
    // Predicated region
    $region42: #{tpu_custom_call.1} parent=1 // pred_check
      _
    $region43: #{tpu_custom_call.1} parent=1 // pred_check_branch
      %87 = sbr.rel (0) target = $region45
    $region44: #{tpu_custom_call.1} parent=1 // pred_region
      %89 = dma.done [#allocation9], 2048
    $region45: #{tpu_custom_call.1} parent=1 // pred_fallthru
      _
    %v90 = vld [vmem:[%s0] sm:$0xff]
    %v91 = vld [vmem:[%s0 + $0x8] sm:$0xff]
    %v92 = vlaneseq
    %v93 = vand.u32 %v92, 127
    %94 = vset.pattern.permute.xlu0 0
    %95 = vperm.xlu0 %94, %v90
    %v96 = vpop.permute.xlu0 %95
    %97 = vset.pattern.permute.xlu0 0
    %98 = vperm.xlu0 %97, %v91
    %v99 = vpop.permute.xlu0 %98
    %vm100 = vcmp.eq.s32.totalorder %v96, %v93
    %vm101 = vcmp.eq.s32.totalorder %v99, %v93
    %v102 = vsel %vm100, 1, 0
    %v103 = vsel %vm101, 1, 0
    %v104 = vcvt.s32.f32 %v102
    %v105 = vcvt.s32.f32 %v103
    %v106 = vld [vmem:[%s1] sm:$0xff]
    %v107 = vld [vmem:[%s1 + $0x8] sm:$0xff]
    %108 = vset.pattern.permute.xlu0 0
    %109 = vperm.xlu0 %108, %v106
    %v110 = vpop.permute.xlu0 %109
    %111 = vset.pattern.permute.xlu0 0
    %112 = vperm.xlu0 %111, %v107
    %v113 = vpop.permute.xlu0 %112
    %vm114 = vcmp.eq.s32.totalorder %v110, %v93
    %vm115 = vcmp.eq.s32.totalorder %v113, %v93
    %v116 = vsel %vm114, 1, 0
    %v117 = vsel %vm115, 1, 0
    %v118 = vcvt.s32.f32 %v116
    %v119 = vcvt.s32.f32 %v117
    %v120 = vld [vmem:[#allocation2] sm:$0xff]
    %v121 = vld [vmem:[#allocation2 + $0x8] sm:$0xff]
    %v122 = vld [vmem:[#allocation2 + $0x10] sm:$0xff]
    %v123 = vld [vmem:[#allocation2 + $0x18] sm:$0xff]
    %v124 = vld [vmem:[#allocation2 + $0x20] sm:$0xff]
    %v125 = vld [vmem:[#allocation2 + $0x28] sm:$0xff]
    %v126 = vld [vmem:[#allocation2 + $0x30] sm:$0xff]
    %v127 = vld [vmem:[#allocation2 + $0x38] sm:$0xff]
    %v128 = vld [vmem:[#allocation5] sm:$0xff]
    %v129 = vld [vmem:[#allocation5 + $0x8] sm:$0xff]
    %v130 = vld [vmem:[#allocation5 + $0x10] sm:$0xff]
    %v131 = vld [vmem:[#allocation5 + $0x18] sm:$0xff]
    %v132 = vld [vmem:[#allocation5 + $0x20] sm:$0xff]
    %v133 = vld [vmem:[#allocation5 + $0x28] sm:$0xff]
    %v134 = vld [vmem:[#allocation5 + $0x30] sm:$0xff]
    %v135 = vld [vmem:[#allocation5 + $0x38] sm:$0xff]
    %vm136 = vcmask 523264
    %v138 = vsel %vm136, %v118, 0
    %v141 = vsel %vm136, %v119, 0
    %143 = vmatpush.msra.mxu0 0.0
    %144 = vmatpush.msra.mxu0 0.0
    %145 = vmatpush.msra.mxu0 0.0
    %146 = vmatpush.msra.mxu0 0.0
    %147 = vmatpush.msra.mxu0 0.0
    %148 = vmatpush.msra.mxu0 0.0
    %149 = vmatpush.msra.mxu0 0.0
    %150 = vmatpush.msra.mxu0 0.0
    %151 = vmatpush.msra.mxu0 %v135
    %152 = vmatpush.msra.mxu0 %v134
    %153 = vmatpush.msra.mxu0 %v133
    %154 = vmatpush.msra.mxu0 %v132
    %155 = vmatpush.msra.mxu0 %v131
    %156 = vmatpush.msra.mxu0 %v130
    %157 = vmatpush.msra.mxu0 %v129
    %158 = vmatpush.msra.mxu0 %v128
    %159 = vmatmul.f32.gmra.mxu0 %v138
    %v160 = vpop.f32.mrf.mxu0
    %v161 = vadd.f32 0.0, %v160
    %162 = vmatmul.f32.gmra.mxu0 %v141
    %v163 = vpop.f32.mrf.mxu0
    %v164 = vadd.f32 0.0, %v163
    %165 = vdwg.mxu0
    %v166 = vld [vmem:[#allocation7] sm:$0xff]
    %v167 = vld [vmem:[#allocation7 + $0x8] sm:$0xff]
    %v168 = vld [vmem:[#allocation7 + $0x10] sm:$0xff]
    %v169 = vld [vmem:[#allocation7 + $0x18] sm:$0xff]
    %v170 = vld [vmem:[#allocation7 + $0x20] sm:$0xff]
    %v171 = vld [vmem:[#allocation7 + $0x28] sm:$0xff]
    %v172 = vld [vmem:[#allocation7 + $0x30] sm:$0xff]
    %v173 = vld [vmem:[#allocation7 + $0x38] sm:$0xff]
    %174 = vmatpush.msra.mxu0 0.0
    %175 = vmatpush.msra.mxu0 0.0
    %176 = vmatpush.msra.mxu0 0.0
    %177 = vmatpush.msra.mxu0 0.0
    %178 = vmatpush.msra.mxu0 0.0
    %179 = vmatpush.msra.mxu0 0.0
    %180 = vmatpush.msra.mxu0 0.0
    %181 = vmatpush.msra.mxu0 0.0
    %182 = vmatpush.msra.mxu0 %v173
    %183 = vmatpush.msra.mxu0 %v172
    %184 = vmatpush.msra.mxu0 %v171
    %185 = vmatpush.msra.mxu0 %v170
    %186 = vmatpush.msra.mxu0 %v169
    %187 = vmatpush.msra.mxu0 %v168
    %188 = vmatpush.msra.mxu0 %v167
    %189 = vmatpush.msra.mxu0 %v166
    %190 = vmatmul.f32.gmra.mxu0 %v138
    %v191 = vpop.f32.mrf.mxu0
    %v192 = vadd.f32 0.0, %v191
    %193 = vmatmul.f32.gmra.mxu0 %v141
    %v194 = vpop.f32.mrf.mxu0
    %v195 = vadd.f32 0.0, %v194
    %196 = vdwg.mxu0
    %v197 = vmax.f32 %v192, 0.0
    %v198 = vmax.f32 %v195, 0.0
    %v199 = vld [vmem:[#allocation8] sm:$0xff]
    %v200 = vld [vmem:[#allocation8 + $0x8] sm:$0xff]
    %v201 = vld [vmem:[#allocation8 + $0x10] sm:$0xff]
    %v202 = vld [vmem:[#allocation8 + $0x18] sm:$0xff]
    %v203 = vld [vmem:[#allocation8 + $0x20] sm:$0xff]
    %v204 = vld [vmem:[#allocation8 + $0x28] sm:$0xff]
    %v205 = vld [vmem:[#allocation8 + $0x30] sm:$0xff]
    %v206 = vld [vmem:[#allocation8 + $0x38] sm:$0xff]
    %v207 = vld [vmem:[#allocation8 + $0x40] sm:$0xff]
    %v208 = vld [vmem:[#allocation8 + $0x48] sm:$0xff]
    %v209 = vld [vmem:[#allocation8 + $0x50] sm:$0xff]
    %v210 = vld [vmem:[#allocation8 + $0x58] sm:$0xff]
    %v211 = vld [vmem:[#allocation8 + $0x60] sm:$0xff]
    %v212 = vld [vmem:[#allocation8 + $0x68] sm:$0xff]
    %v213 = vld [vmem:[#allocation8 + $0x70] sm:$0xff]
    %v214 = vld [vmem:[#allocation8 + $0x78] sm:$0xff]
    %v215 = vld [vmem:[%s6] sm:$0x1]
    %v217 = vperm.slane %v215, 0
    %219 = vmatpush.msra.mxu0 %v214
    %220 = vmatpush.msra.mxu0 %v213
    %221 = vmatpush.msra.mxu0 %v212
    %222 = vmatpush.msra.mxu0 %v211
    %223 = vmatpush.msra.mxu0 %v210
    %224 = vmatpush.msra.mxu0 %v209
    %225 = vmatpush.msra.mxu0 %v208
    %226 = vmatpush.msra.mxu0 %v207
    %227 = vmatpush.msra.mxu0 %v206
    %228 = vmatpush.msra.mxu0 %v205
    %229 = vmatpush.msra.mxu0 %v204
    %230 = vmatpush.msra.mxu0 %v203
    %231 = vmatpush.msra.mxu0 %v202
    %232 = vmatpush.msra.mxu0 %v201
    %233 = vmatpush.msra.mxu0 %v200
    %234 = vmatpush.msra.mxu0 %v199
    %235 = vmatmul.f32.gmra.mxu0 %v197
    %v236 = vpop.f32.mrf.mxu0
    %v237 = vadd.f32 %v217, %v236
    %238 = vmatmul.f32.gmra.mxu0 %v198
    %v239 = vpop.f32.mrf.mxu0
    %v240 = vadd.f32 %v217, %v239
    %241 = vdwg.mxu0
    %vm242 = vcmp.ge.s32.totalorder %v93, 64
    %vm243 = vcmp.lt.s32.totalorder %v93, 68
    %vm244 = vmand %vm242, %vm243
    %v245 = vsel %vm244, 1, 0
    %v246 = vcvt.s32.f32 %v245
    %v247 = vxor.u32 %v237, 2147483648
    %v248 = vxor.u32 %v240, 2147483648
    %v249 = vmul.f32 %v247, 1.442695
    %v250 = vpow.pop %v249
    %v251 = vmul.f32 %v248, 1.442695
    %v252 = vpow.pop %v251
    %v253 = vadd.f32 %v250, 1.0
    %v254 = vadd.f32 %v252, 1.0
    %v255 = vrcp.pop %v253
    %v256 = vmul.f32 %v253, %v255
    %v257 = vsub.f32 1.0, %v256
    %v258 = vmul.f32 %v255, %v257
    %v259 = vadd.f32 %v255, %v258
    %vm260 = vweird.f32 %v253
    %vm261 = vweird.f32 %v255
    %vm262 = vmor %vm260, %vm261
    %v263 = vsel %vm262, %v255, %v259
    %v264 = vand.u32 2147483647, %v253
    %vm265 = vcmp.eq.f32.partialorder %v264, 8.507059e+37
    %v266 = vand.u32 %v253, 2147483648
    %v267 = vor.u32 1.1754944e-38, %v266
    %v268 = vsel %vm265, %v267, %v263
    %v269 = vmul.f32 1.0, %v268
    %v270 = vrcp.pop %v254
    %v271 = vmul.f32 %v254, %v270
    %v272 = vsub.f32 1.0, %v271
    %v273 = vmul.f32 %v270, %v272
    %v274 = vadd.f32 %v270, %v273
    %vm275 = vweird.f32 %v254
    %vm276 = vweird.f32 %v270
    %vm277 = vmor %vm275, %vm276
    %v278 = vsel %vm277, %v270, %v274
    %v279 = vand.u32 2147483647, %v254
    %vm280 = vcmp.eq.f32.partialorder %v279, 8.507059e+37
    %v281 = vand.u32 %v254, 2147483648
    %v282 = vor.u32 1.1754944e-38, %v281
    %v283 = vsel %vm280, %v282, %v278
    %v284 = vmul.f32 1.0, %v283
    %v285 = vmul.f32 %v269, %v246
    %v286 = vmul.f32 %v284, %v246
    %v288 = vsel %vm136, %v104, 0
    %v291 = vsel %vm136, %v105, 0
    %293 = vmatpush.msra.mxu0 0.0
    %294 = vmatpush.msra.mxu0 0.0
    %295 = vmatpush.msra.mxu0 0.0
    %296 = vmatpush.msra.mxu0 0.0
    %297 = vmatpush.msra.mxu0 0.0
    %298 = vmatpush.msra.mxu0 0.0
    %299 = vmatpush.msra.mxu0 0.0
    %300 = vmatpush.msra.mxu0 0.0
    %301 = vmatpush.msra.mxu0 %v127
    %302 = vmatpush.msra.mxu0 %v126
    %303 = vmatpush.msra.mxu0 %v125
    %304 = vmatpush.msra.mxu0 %v124
    %305 = vmatpush.msra.mxu0 %v123
    %306 = vmatpush.msra.mxu0 %v122
    %307 = vmatpush.msra.mxu0 %v121
    %308 = vmatpush.msra.mxu0 %v120
    %309 = vmatmul.f32.gmra.mxu0 %v288
    %v310 = vpop.f32.mrf.mxu0
    %v311 = vadd.f32 %v161, %v310
    %312 = vmatmul.f32.gmra.mxu0 %v291
    %v313 = vpop.f32.mrf.mxu0
    %v314 = vadd.f32 %v164, %v313
    %315 = vdwg.mxu0
    %v316 = vadd.f32 %v311, %v285
    %v317 = vadd.f32 %v314, %v286
    %318 = vst [vmem:[#allocation10] sm:$0xff] %v316
    %319 = vst [vmem:[#allocation10 + $0x8] sm:$0xff] %v317
    // Predicated region
    $region46: #{tpu_custom_call.1} parent=1 // pred_check
      _
    $region47: #{tpu_custom_call.1} parent=1 // pred_check_branch
      %321 = sbr.rel (0) target = $region49
    $region48: #{tpu_custom_call.1} parent=1 // pred_region
      %323 = vsyncadd [#allocation4], 0
      %s324 = sshll.u32 [#allocation10], 4
      %s325 = int_to_ptr.vmem [resolvable:$true] %s324
      %s326 = sshll.u32 %s7, 4
      %s327 = int_to_ptr.hbm [resolvable:$true] %s326
      %332 = dma.vmem_to_hbm [thread:$0]  %s325, 256, %s327, [#allocation4], 128, 128, 8
    $region49: #{tpu_custom_call.1} parent=1 // pred_fallthru
      _
    // Predicated region
    $region50: #{tpu_custom_call.1} parent=1 // pred_check
      _
    $region51: #{tpu_custom_call.1} parent=1 // pred_check_branch
      %334 = sbr.rel (0) target = $region53
    $region52: #{tpu_custom_call.1} parent=1 // pred_region
      %336 = dma.done [#allocation4], 256
    $region53: #{tpu_custom_call.1} parent=1 // pred_fallthru
      _
    %337 = vsyncpa [#allocation3], 1
    %338 = vsyncpa [#allocation6], 1
    %339 = vsyncpa [#allocation9], 1
    %340 = vsyncpa [#allocation4], 1

</llo_original>
